<compile_context>
chip_gen: v7x
topology: tpu7x:2x2x1
jax: 0.10.0
libtpu: 0.0.40
codegen_flags: <defaults>
</compile_context>

<pallas_src>
import jax
import jax.numpy as jnp
from jax.experimental import pallas as pl
from jax.experimental.pallas import tpu as pltpu

LANE = 128
_NOMINAL_TM = 512  # largest batch tile we will ever pick


def _round_up(n, m):
    return ((n + m - 1) // m) * m


def _vmem_budget_bytes():
    """~60% of physical per-core VMEM; assume 64 MiB (v7x per-TC) if unknown."""
    try:
        cap = pltpu.get_tpu_info().vmem_capacity_bytes
    except Exception:
        cap = 64 * 1024 * 1024
    return int(cap * 0.6)


def _vmem_footprint(tm, th, in_p, out_p, out_itemsize):
    """Per-step VMEM footprint (bytes), double-buffered tiles included."""
    return (
        2 * tm * in_p * 2                  # x tile (bf16, 2 bufs)
        + 2 * tm * out_p * out_itemsize    # out tile (2 bufs)
        + 2 * in_p * th * 2                # W1 block (bf16, 2 bufs)
        + 2 * th * out_p * 2               # W2 block (bf16, 2 bufs)
        + 2 * (th + out_p) * 4             # bias blocks (f32, 2 bufs)
        + tm * out_p * 4                   # f32 accumulator scratch
        + tm * th * (4 + 2)                # f32 hidden + bf16 copy for 2nd matmul
    )


def mlp_kernel(x_ref, w1_ref, b1_ref, w2_ref, b2_ref, o_ref, acc_ref):
    k = pl.program_id(1)

    @pl.when(k == 0)
    def _():
        acc_ref[...] = jnp.zeros_like(acc_ref)

    # fc1 slice on the MXU: bf16 operands, f32 accumulation; bias + ReLU in f32
    # (elementwise over the H slice, so per-slice ReLU == full-H ReLU).
    h = jnp.dot(x_ref[...], w1_ref[...], preferred_element_type=jnp.float32)
    h = jnp.maximum(h + b1_ref[...], 0.0)

    # fc2 partial product for this H slice, accumulated in f32.
    acc_ref[...] += jnp.dot(h.astype(jnp.bfloat16), w2_ref[...],
                            preferred_element_type=jnp.float32)

    @pl.when(k == pl.num_programs(1) - 1)
    def _():
        o_ref[...] = (acc_ref[...] + b2_ref[...]).astype(o_ref.dtype)


def prepare_mlp_weights(w1, b1, w2, b2, *, vmem_budget=None):
    """One-time pad + bf16 cast of the weights (hoisted out of the call path).

    w1: (In, H); b1: (H,); w2: (H, Out); b2: (Out,).
    """
    In, H = w1.shape
    Out = w2.shape[1]
    in_p = _round_up(In, LANE)
    out_p = _round_up(Out, LANE)
    budget = _vmem_budget_bytes() if vmem_budget is None else int(vmem_budget)

    # Pick the H-axis block so streamed blocks fit the budget at the nominal
    # (largest) batch tile; H is padded to a multiple of th so the grid divides.
    # NOTE: v6e/v7x MXUs prefer 256-aligned dims; 128 keeps v5e native and the
    # padding waste minimal for small layers.
    th = _round_up(H, LANE)
    while th > LANE and _vmem_footprint(_NOMINAL_TM, th, in_p, out_p, 4) > budget:
        th = max(LANE, _round_up(th // 2, LANE))
    h_p = _round_up(H, th)

    # Zero padding is neutral through relu(x@W1+b1)@W2+b2 on the kept slice.
    w1_p = jnp.zeros((in_p, h_p), jnp.bfloat16).at[:In, :H].set(
        w1.astype(jnp.bfloat16))
    b1_p = jnp.zeros((1, h_p), jnp.float32).at[0, :H].set(b1.astype(jnp.float32))
    w2_p = jnp.zeros((h_p, out_p), jnp.bfloat16).at[:H, :Out].set(
        w2.astype(jnp.bfloat16))
    b2_p = jnp.zeros((1, out_p), jnp.float32).at[0, :Out].set(
        b2.astype(jnp.float32))

    return dict(w1=w1_p, b1=b1_p, w2=w2_p, b2=b2_p,
                dims=(In, H, Out), padded=(in_p, h_p, out_p),
                th=th, budget=budget)


def mlp_forward(x, prepared, *, tm=None, out_dtype=None):
    """x: (..., In) -> (..., Out). `prepared` comes from prepare_mlp_weights."""
    In, H, Out = prepared["dims"]
    in_p, h_p, out_p = prepared["padded"]
    th = prepared["th"]
    budget = prepared["budget"]
    out_dtype = x.dtype if out_dtype is None else out_dtype
    out_itemsize = jnp.dtype(out_dtype).itemsize

    if x.shape[-1] != In:
        raise ValueError(f"last dim of x must be {In}, got {x.shape[-1]}")
    lead_shape = x.shape[:-1]
    x2 = x.reshape(-1, In)
    B = x2.shape[0]

    # Batch tile: small B rounds up to a sublane multiple (single tile);
    # larger B keeps >=2 grid steps so v7x's 2 TensorCores both get work.
    if tm is None:
        if B <= 256:
            tm = _round_up(max(B, 1), 8)
        else:
            tm = _NOMINAL_TM
            while tm > 128 and pl.cdiv(B, tm) < 2:
                tm //= 2
    # Shrink the batch tile until the footprint fits the per-core VMEM budget.
    while tm > 8 and _vmem_footprint(tm, th, in_p, out_p, out_itemsize) > budget:
        tm = max(8, tm // 2)
    b_p = _round_up(B, tm)

    # Pad + bf16-cast x only when actually needed (aligned case is pass-through
    # modulo the bf16 cast).
    if b_p == B and in_p == In:
        x_p = x2 if x2.dtype == jnp.bfloat16 else x2.astype(jnp.bfloat16)
    else:
        x_p = jnp.zeros((b_p, in_p), jnp.bfloat16).at[:B, :In].set(
            x2.astype(jnp.bfloat16))

    n_bt = b_p // tm
    n_kt = h_p // th
    footprint = _vmem_footprint(tm, th, in_p, out_p, out_itemsize)
    vmem_limit = min(budget, max(2 * footprint, 8 * 1024 * 1024))

    flops = 2 * b_p * h_p * (in_p + out_p)
    bytes_accessed = (
        x_p.size * 2 + b_p * out_p * out_itemsize
        + n_bt * ((in_p * h_p + h_p * out_p) * 2 + (h_p + out_p) * 4))

    y_pad = pl.pallas_call(
        mlp_kernel,
        out_shape=jax.ShapeDtypeStruct((b_p, out_p), out_dtype),
        grid=(n_bt, n_kt),
        in_specs=[
            pl.BlockSpec((tm, in_p), lambda i, k: (i, 0)),    # x: batch-tiled
            pl.BlockSpec((in_p, th), lambda i, k: (0, k)),    # W1: H-streamed
            pl.BlockSpec((1, th), lambda i, k: (0, k)),       # b1: H-streamed
            pl.BlockSpec((th, out_p), lambda i, k: (k, 0)),   # W2: H-streamed
            pl.BlockSpec((1, out_p), lambda i, k: (0, 0)),    # b2: resident
        ],
        out_specs=pl.BlockSpec((tm, out_p), lambda i, k: (i, 0)),
        scratch_shapes=[pltpu.VMEM((tm, out_p), jnp.float32)],
        compiler_params=pltpu.CompilerParams(
            dimension_semantics=("parallel", "arbitrary"),
            vmem_limit_bytes=int(vmem_limit),
        ),
        cost_estimate=pl.CostEstimate(
            flops=int(flops), transcendentals=0,
            bytes_accessed=int(bytes_accessed)),
    )(x_p, prepared["w1"], prepared["b1"], prepared["w2"], prepared["b2"])

    out = y_pad
    if b_p != B or out_p != Out:
        out = out[:B, :Out]
    return out.reshape(*lead_shape, Out)


if __name__ == "__main__":
    # Shapes implied by the module: Linear(input_size, hidden_size),
    # Linear(hidden_size, output_size).
    B, input_size, hidden_size, output_size = 8, 32, 64, 16

    key = jax.random.PRNGKey(0)
    kx, kw1, kb1, kw2, kb2 = jax.random.split(key, 5)

    x = jax.random.normal(kx, (B, input_size), dtype=jnp.float32)

    # Deterministic init mimicking nn.Linear's uniform(-1/sqrt(fan_in), +).
    lim1 = 1.0 / jnp.sqrt(input_size)
    lim2 = 1.0 / jnp.sqrt(hidden_size)
    w1 = jax.random.uniform(kw1, (input_size, hidden_size),
                            minval=-lim1, maxval=lim1, dtype=jnp.float32)
    b1 = jax.random.uniform(kb1, (hidden_size,),
                            minval=-lim1, maxval=lim1, dtype=jnp.float32)
    w2 = jax.random.uniform(kw2, (hidden_size, output_size),
                            minval=-lim2, maxval=lim2, dtype=jnp.float32)
    b2 = jax.random.uniform(kb2, (output_size,),
                            minval=-lim2, maxval=lim2, dtype=jnp.float32)

    # Weight pad + bf16 cast hoisted: done exactly once, reused across calls.
    prepared = prepare_mlp_weights(w1, b1, w2, b2)

    out = mlp_forward(x, prepared)
    jax.block_until_ready(out)
    assert out.shape == (B, output_size)

    # Reference with matching precision (bf16 matmul operands, f32 accumulate).
    xb, w1b, w2b = (a.astype(jnp.bfloat16) for a in (x, w1, w2))
    h_ref = jnp.maximum(
        jnp.dot(xb, w1b, preferred_element_type=jnp.float32) + b1, 0.0)
    ref = jnp.dot(h_ref.astype(jnp.bfloat16), w2b,
                  preferred_element_type=jnp.float32) + b2
    assert jnp.allclose(out, ref, atol=1e-2, rtol=1e-2)

    # Sanity vs. full-f32 math (looser tolerance due to bf16 MXU feeding).
    ref_f32 = jnp.maximum(x @ w1 + b1, 0.0) @ w2 + b2
    assert jnp.allclose(out, ref_f32, atol=5e-2, rtol=5e-2)

    print("KERNEL_OK")
</pallas_src>

<mosaic_0001>
module attributes {stable_mosaic.version = 11 : i64} {
  func.func @mlp_kernel(%arg0: i32, %arg1: i32, %arg2: memref<8x128xbf16, #tpu.memory_space<vmem>>, %arg3: memref<128x128xbf16, #tpu.memory_space<vmem>>, %arg4: memref<1x128xf32, #tpu.memory_space<vmem>>, %arg5: memref<128x128xbf16, #tpu.memory_space<vmem>>, %arg6: memref<1x128xf32, #tpu.memory_space<vmem>>, %arg7: memref<8x128xf32, #tpu.memory_space<vmem>>, %arg8: memref<8x128xf32, #tpu.memory_space<vmem>>) attributes {dimension_semantics = [#tpu.dimension_semantics<parallel>, #tpu.dimension_semantics<arbitrary>], iteration_bounds = array<i64: 1, 1>, scalar_prefetch = 0 : i64, scratch_operands = 1 : i64, tpu.core_type = #tpu.core_type<tc>, window_params = [{transform_indices = @transform_0, window_bounds = array<i64: 8, 128>}, {transform_indices = @transform_1, window_bounds = array<i64: 128, 128>}, {transform_indices = @transform_2, window_bounds = array<i64: 1, 128>}, {transform_indices = @transform_3, window_bounds = array<i64: 128, 128>}, {pipeline_mode = #tpu.pipeline_mode<synchronous>, transform_indices = @transform_4, window_bounds = array<i64: 1, 128>}, {transform_indices = @transform_5, window_bounds = array<i64: 8, 128>}]} {
    %c0_i32 = arith.constant 0 : i32
    %0 = arith.cmpi eq, %arg1, %c0_i32 : i32
    %1 = arith.extui %0 : i1 to i32
    %c0_i32_0 = arith.constant 0 : i32
    %2 = arith.cmpi ne, %1, %c0_i32_0 : i32
    scf.if %2 {
      %cst_16 = arith.constant 0.000000e+00 : f32
      %20 = vector.broadcast %cst_16 : f32 to vector<8x128xf32>
      %c0_17 = arith.constant 0 : index
      %c0_18 = arith.constant 0 : index
      %21 = vector.load %arg8[%c0_17, %c0_18] : memref<8x128xf32, #tpu.memory_space<vmem>>, vector<8x128xf32>
      tpu.vector_store %arg8[%c0_17, %c0_18], %20 {strides = array<i32>} : memref<8x128xf32, #tpu.memory_space<vmem>>, vector<8x128xf32>,
    } else {
    }
    %c0 = arith.constant 0 : index
    %c0_1 = arith.constant 0 : index
    %3 = vector.load %arg2[%c0, %c0_1] : memref<8x128xbf16, #tpu.memory_space<vmem>>, vector<8x128xbf16>
    %c0_2 = arith.constant 0 : index
    %c0_3 = arith.constant 0 : index
    %4 = vector.load %arg3[%c0_2, %c0_3] : memref<128x128xbf16, #tpu.memory_space<vmem>>, vector<128x128xbf16>
    %cst = arith.constant dense<0.000000e+00> : vector<8x128xf32>
    %5 = tpu.matmul %3, %4, %cst {dimension_numbers = #tpu.dot_dimension_numbers<[1], [0], [0], [1], [0, 0, 1, 1], [], []>} : vector<8x128xbf16>, vector<128x128xbf16>, vector<8x128xf32> -> vector<8x128xf32>
    %c0_4 = arith.constant 0 : index
    %c0_5 = arith.constant 0 : index
    %6 = vector.load %arg4[%c0_4, %c0_5] : memref<1x128xf32, #tpu.memory_space<vmem>>, vector<1x128xf32>
    %7 = vector.broadcast %6 : vector<1x128xf32> to vector<8x128xf32>
    %8 = arith.addf %5, %7 : vector<8x128xf32>
    %cst_6 = arith.constant 0.000000e+00 : f32
    %9 = vector.broadcast %cst_6 : f32 to vector<8x128xf32>
    %10 = arith.maximumf %8, %9 : vector<8x128xf32>
    %c0_7 = arith.constant 0 : index
    %c0_8 = arith.constant 0 : index
    %11 = vector.load %arg8[%c0_7, %c0_8] : memref<8x128xf32, #tpu.memory_space<vmem>>, vector<8x128xf32>
    %12 = arith.truncf %10 : vector<8x128xf32> to vector<8x128xbf16>
    %c0_9 = arith.constant 0 : index
    %c0_10 = arith.constant 0 : index
    %13 = vector.load %arg5[%c0_9, %c0_10] : memref<128x128xbf16, #tpu.memory_space<vmem>>, vector<128x128xbf16>
    %cst_11 = arith.constant dense<0.000000e+00> : vector<8x128xf32>
    %14 = tpu.matmul %12, %13, %cst_11 {dimension_numbers = #tpu.dot_dimension_numbers<[1], [0], [0], [1], [0, 0, 1, 1], [], []>} : vector<8x128xbf16>, vector<128x128xbf16>, vector<8x128xf32> -> vector<8x128xf32>
    %15 = arith.addf %11, %14 : vector<8x128xf32>
    %c0_12 = arith.constant 0 : index
    %c0_13 = arith.constant 0 : index
    %16 = vector.load %arg8[%c0_12, %c0_13] : memref<8x128xf32, #tpu.memory_space<vmem>>, vector<8x128xf32>
    tpu.vector_store %arg8[%c0_12, %c0_13], %15 {strides = array<i32>} : memref<8x128xf32, #tpu.memory_space<vmem>>, vector<8x128xf32>,
    %c0_i32_14 = arith.constant 0 : i32
    %17 = arith.cmpi eq, %arg1, %c0_i32_14 : i32
    %18 = arith.extui %17 : i1 to i32
    %c0_i32_15 = arith.constant 0 : i32
    %19 = arith.cmpi ne, %18, %c0_i32_15 : i32
    scf.if %19 {
      %c0_16 = arith.constant 0 : index
      %c0_17 = arith.constant 0 : index
      %20 = vector.load %arg8[%c0_16, %c0_17] : memref<8x128xf32, #tpu.memory_space<vmem>>, vector<8x128xf32>
      %c0_18 = arith.constant 0 : index
      %c0_19 = arith.constant 0 : index
      %21 = vector.load %arg6[%c0_18, %c0_19] : memref<1x128xf32, #tpu.memory_space<vmem>>, vector<1x128xf32>
      %22 = vector.broadcast %21 : vector<1x128xf32> to vector<8x128xf32>
      %23 = arith.addf %20, %22 : vector<8x128xf32>
      %c0_20 = arith.constant 0 : index
      %c0_21 = arith.constant 0 : index
      %24 = vector.load %arg7[%c0_20, %c0_21] : memref<8x128xf32, #tpu.memory_space<vmem>>, vector<8x128xf32>
      tpu.vector_store %arg7[%c0_20, %c0_21], %23 {strides = array<i32>} : memref<8x128xf32, #tpu.memory_space<vmem>>, vector<8x128xf32>,
    } else {
    }
    return
  }
  func.func @transform_0(%arg0: i32, %arg1: i32) -> (i32, i32) {
    %c0_i32 = arith.constant 0 : i32
    %c0_i32_0 = arith.constant 0 : i32
    return %arg0, %c0_i32 : i32, i32
  }
  func.func @transform_1(%arg0: i32, %arg1: i32) -> (i32, i32) {
    %c0_i32 = arith.constant 0 : i32
    %c0_i32_0 = arith.constant 0 : i32
    return %c0_i32, %arg1 : i32, i32
  }
  func.func @transform_2(%arg0: i32, %arg1: i32) -> (i32, i32) {
    %c0_i32 = arith.constant 0 : i32
    %c0_i32_0 = arith.constant 0 : i32
    return %c0_i32, %arg1 : i32, i32
  }
  func.func @transform_3(%arg0: i32, %arg1: i32) -> (i32, i32) {
    %c0_i32 = arith.constant 0 : i32
    %c0_i32_0 = arith.constant 0 : i32
    return %arg1, %c0_i32 : i32, i32
  }
  func.func @transform_4(%arg0: i32, %arg1: i32) -> (i32, i32) {
    %c0_i32 = arith.constant 0 : i32
    %c0_i32_0 = arith.constant 0 : i32
    %c0_i32_1 = arith.constant 0 : i32
    return %c0_i32, %c0_i32_0 : i32, i32
  }
  func.func @transform_5(%arg0: i32, %arg1: i32) -> (i32, i32) {
    %c0_i32 = arith.constant 0 : i32
    %c0_i32_0 = arith.constant 0 : i32
    return %arg0, %c0_i32 : i32, i32
  }
}

</mosaic_0001>

<llo_original>
// kernel: tpu_custom_call.1
$region0: #{tpu_custom_call.1}
  #allocation0 [shape = 'u32[]', space=smem, size = 0x4, offset = 0x4, fixed_abs, tag = 'smem constant byte address 0x4 - core index']
  #allocation1 [shape = 'u32[144,128]{1,0:T(1,128)}', space=vmem, size = 0x12000, scoped, tag = 'internal scratch']
  #allocation2 [shape = 'f32[8,128]{1,0:T(8,128)}', space=vmem, size = 0x1000, scoped, tag = 'scratch operand']
  %s0 = inlined_call_operand.hbm [shape: bf16[8,128], index: 0, kind: input, shape index: {}]
  %s1 = inlined_call_operand.hbm [shape: bf16[128,128], index: 1, kind: input, shape index: {}]
  %s2 = inlined_call_operand.vmem [shape: f32[1,128], index: 2, kind: input, shape index: {}]
  %s3 = inlined_call_operand.hbm [shape: bf16[128,128], index: 3, kind: input, shape index: {}]
  %s4 = inlined_call_operand.vmem [shape: f32[1,128], index: 4, kind: input, shape index: {}]
  %s5 = inlined_call_operand.hbm [shape: f32[8,128], index: 5, kind: output, shape index: {}]
  %s6 = sld [smem:[#allocation0]]
  $region50: #{tpu_custom_call.1} parent=0
    _
  %s8 = ssub.s32 1, %s6
  %s9 = scalar_select 0, %s8, %s6
  $region1: #{tpu_custom_call.1} parent=0
    #allocation3 [shape = 'u8[2048]{0}', space=vmem, size = 0x800, scoped, tag = 'input window, operand 0, single buffered']
    #allocation4 [shape = 's32[1]{0}', space=sflag, size = 0x4, scoped, tag = 'scoped memory for tpu_custom_call.1']
    #allocation5 [shape = 's32[1]{0}', space=sflag, size = 0x4, scoped, tag = 'scoped memory for tpu_custom_call.1']
    #allocation6 [shape = 'u8[32768]{0}', space=vmem, size = 0x8000, scoped, tag = 'input window, operand 1, single buffered']
    #allocation7 [shape = 's32[1]{0}', space=sflag, size = 0x4, scoped, tag = 'scoped memory for tpu_custom_call.1']
    #allocation8 [shape = 'u8[32768]{0}', space=vmem, size = 0x8000, scoped, tag = 'input window, operand 3, single buffered']
    #allocation9 [shape = 'u8[4096]{0}', space=vmem, size = 0x1000, scoped, tag = 'output window, operand 0, single buffered']
    %10 = vsyncpa [#allocation4], 0
    %11 = vsyncpa [#allocation7], 0
    %12 = vsyncpa [#allocation5], 0
    // Predicated region
    $region2: #{tpu_custom_call.1} parent=1 // pred_check
      _
    $region3: #{tpu_custom_call.1} parent=1 // pred_check_branch
      %14 = sbr.rel (0) target = $region5
    $region4: #{tpu_custom_call.1} parent=1 // pred_region
      %s16 = ssub.s32 64, 64
      %17 = vsyncadd [#allocation4], %s16
      %s19 = sshll.u32 [#allocation3], 4
      %s20 = int_to_ptr.vmem [resolvable:$true] %s19
      %22 = dma.hbm_to_vmem [thread:$0]  %s0, 64, %s20, [#allocation4]
    $region5: #{tpu_custom_call.1} parent=1 // pred_fallthru
      _
    // Predicated region
    $region6: #{tpu_custom_call.1} parent=1 // pred_check
      _
    $region7: #{tpu_custom_call.1} parent=1 // pred_check_branch
      %24 = sbr.rel (0) target = $region9
    $region8: #{tpu_custom_call.1} parent=1 // pred_region
      %s26 = ssub.s32 1024, 1024
      %27 = vsyncadd [#allocation7], %s26
      %s28 = sshll.u32 [#allocation6], 4
      %s29 = int_to_ptr.vmem [resolvable:$true] %s28
      %34 = dma.hbm_to_vmem [thread:$0]  %s1, 1024, %s29, [#allocation7], 64, 64, 4
    $region9: #{tpu_custom_call.1} parent=1 // pred_fallthru
      _
    // Predicated region
    $region10: #{tpu_custom_call.1} parent=1 // pred_check
      _
    $region11: #{tpu_custom_call.1} parent=1 // pred_check_branch
      %36 = sbr.rel (0) target = $region13
    $region12: #{tpu_custom_call.1} parent=1 // pred_region
      _
    $region13: #{tpu_custom_call.1} parent=1 // pred_fallthru
      _
    // Predicated region
    $region14: #{tpu_custom_call.1} parent=1 // pred_check
      _
    $region15: #{tpu_custom_call.1} parent=1 // pred_check_branch
      %38 = sbr.rel (0) target = $region17
    $region16: #{tpu_custom_call.1} parent=1 // pred_region
      %s40 = ssub.s32 1024, 1024
      %41 = vsyncadd [#allocation7], %s40
      %s42 = sshll.u32 [#allocation8], 4
      %s43 = int_to_ptr.vmem [resolvable:$true] %s42
      %48 = dma.hbm_to_vmem [thread:$0]  %s3, 1024, %s43, [#allocation7], 64, 64, 4
    $region17: #{tpu_custom_call.1} parent=1 // pred_fallthru
      _
    // Predicated region
    $region18: #{tpu_custom_call.1} parent=1 // pred_check
      _
    $region19: #{tpu_custom_call.1} parent=1 // pred_check_branch
      %50 = sbr.rel (0) target = $region21
    $region20: #{tpu_custom_call.1} parent=1 // pred_region
      _
    $region21: #{tpu_custom_call.1} parent=1 // pred_fallthru
      _
    // Predicated region
    $region22: #{tpu_custom_call.1} parent=1 // pred_check
      _
    $region23: #{tpu_custom_call.1} parent=1 // pred_check_branch
      %52 = sbr.rel (0) target = $region25
    $region24: #{tpu_custom_call.1} parent=1 // pred_region
      %53 = dma.done [#allocation4], 64
    $region25: #{tpu_custom_call.1} parent=1 // pred_fallthru
      _
    // Predicated region
    $region26: #{tpu_custom_call.1} parent=1 // pred_check
      _
    $region27: #{tpu_custom_call.1} parent=1 // pred_check_branch
      %55 = sbr.rel (0) target = $region29
    $region28: #{tpu_custom_call.1} parent=1 // pred_region
      %56 = dma.done [#allocation7], 1024
    $region29: #{tpu_custom_call.1} parent=1 // pred_fallthru
      _
    // Predicated region
    $region30: #{tpu_custom_call.1} parent=1 // pred_check
      _
    $region31: #{tpu_custom_call.1} parent=1 // pred_check_branch
      %58 = sbr.rel (0) target = $region33
    $region32: #{tpu_custom_call.1} parent=1 // pred_region
      %59 = dma.done [#allocation7], 1024
    $region33: #{tpu_custom_call.1} parent=1 // pred_fallthru
      _
    %p61 = scmp.eq.s32.totalorder 0, 0
    // Predicated region
    $region34: #{tpu_custom_call.1} parent=1 // pred_check
      %p62 = pneg %p61
    $region35: #{tpu_custom_call.1} parent=1 // pred_check_branch
      %64 = sbr.rel (%p62) target = $region37
    $region36: #{tpu_custom_call.1} parent=1 // pred_region
      %65 = vst [vmem:[#allocation2] sm:$0xff] 0.0
    $region37: #{tpu_custom_call.1} parent=1 // pred_fallthru
      _
    %v66 = vld [vmem:[#allocation3] sm:$0xf]
    %v67 = vld [vmem:[#allocation6] sm:$0xf]
    %v68 = vld [vmem:[#allocation6 + $0x4] sm:$0xf]
    %v69 = vld [vmem:[#allocation6 + $0x8] sm:$0xf]
    %v70 = vld [vmem:[#allocation6 + $0xc] sm:$0xf]
    %v71 = vld [vmem:[#allocation6 + $0x10] sm:$0xf]
    %v72 = vld [vmem:[#allocation6 + $0x14] sm:$0xf]
    %v73 = vld [vmem:[#allocation6 + $0x18] sm:$0xf]
    %v74 = vld [vmem:[#allocation6 + $0x1c] sm:$0xf]
    %v75 = vld [vmem:[#allocation6 + $0x20] sm:$0xf]
    %v76 = vld [vmem:[#allocation6 + $0x24] sm:$0xf]
    %v77 = vld [vmem:[#allocation6 + $0x28] sm:$0xf]
    %v78 = vld [vmem:[#allocation6 + $0x2c] sm:$0xf]
    %v79 = vld [vmem:[#allocation6 + $0x30] sm:$0xf]
    %v80 = vld [vmem:[#allocation6 + $0x34] sm:$0xf]
    %v81 = vld [vmem:[#allocation6 + $0x38] sm:$0xf]
    %v82 = vld [vmem:[#allocation6 + $0x3c] sm:$0xf]
    %v83 = vld [vmem:[%s2] sm:$0x1]
    %v85 = vlaneseq
    %v86 = vshrl.u32 %v85, 7
    %v87 = vsub.s32 0, %v86
    %v88 = vrot.slane %v83, %v87
    %v106 = vunpack.c.l.b16 %v67
    %v107 = vunpack.c.l.b16 %v68
    %v108 = vunpack.c.l.b16 %v69
    %v109 = vunpack.c.l.b16 %v70
    %v110 = vunpack.c.l.b16 %v71
    %v111 = vunpack.c.l.b16 %v72
    %v112 = vunpack.c.l.b16 %v73
    %v113 = vunpack.c.l.b16 %v74
    %v114 = vunpack.c.l.b16 %v75
    %v115 = vunpack.c.l.b16 %v76
    %v116 = vunpack.c.l.b16 %v77
    %v117 = vunpack.c.l.b16 %v78
    %v118 = vunpack.c.l.b16 %v79
    %v119 = vunpack.c.l.b16 %v80
    %v120 = vunpack.c.l.b16 %v81
    %v121 = vunpack.c.l.b16 %v82
    %v122 = vpack.c.b16 %v107, %v106
    %v123 = vpack.c.b16 %v109, %v108
    %v124 = vpack.c.b16 %v111, %v110
    %v125 = vpack.c.b16 %v113, %v112
    %v126 = vpack.c.b16 %v115, %v114
    %v127 = vpack.c.b16 %v117, %v116
    %v128 = vpack.c.b16 %v119, %v118
    %v129 = vpack.c.b16 %v121, %v120
    %138 = vmatprep.subr.bf16.mxu0 0
    %139 = vmatpush1.bf16.msra.mxu0 %v122
    %140 = vmatprep.subr.bf16.mxu0 0
    %141 = vmatpush1.bf16.msra.mxu0 %v123
    %142 = vmatprep.subr.bf16.mxu0 0
    %143 = vmatpush1.bf16.msra.mxu0 %v124
    %144 = vmatprep.subr.bf16.mxu0 0
    %145 = vmatpush1.bf16.msra.mxu0 %v125
    %146 = vmatprep.subr.bf16.mxu0 0
    %147 = vmatpush1.bf16.msra.mxu0 %v126
    %148 = vmatprep.subr.bf16.mxu0 0
    %149 = vmatpush1.bf16.msra.mxu0 %v127
    %150 = vmatprep.subr.bf16.mxu0 0
    %151 = vmatpush1.bf16.msra.mxu0 %v128
    %152 = vmatprep.subr.bf16.mxu0 0
    %153 = vmatpush1.bf16.msra.mxu0 %v129
    %154 = vmatprep.subr.bf16.mxu0 0
    %155 = vmatpush1.bf16.msra.mxu0 0
    %156 = vmatprep.subr.bf16.mxu0 0
    %157 = vmatpush1.bf16.msra.mxu0 0
    %158 = vmatprep.subr.bf16.mxu0 0
    %159 = vmatpush1.bf16.msra.mxu0 0
    %160 = vmatprep.subr.bf16.mxu0 0
    %161 = vmatpush1.bf16.msra.mxu0 0
    %162 = vmatprep.subr.bf16.mxu0 0
    %163 = vmatpush1.bf16.msra.mxu0 0
    %164 = vmatprep.subr.bf16.mxu0 0
    %165 = vmatpush1.bf16.msra.mxu0 0
    %166 = vmatprep.subr.bf16.mxu0 0
    %167 = vmatpush1.bf16.msra.mxu0 0
    %168 = vmatprep.subr.bf16.mxu0 0
    %169 = vmatpush1.bf16.msra.mxu0 0
    %170 = vmatprep.mubr.bf16.mxu0 0
    %171 = vmatmul.mubr.bf16.gmra.mrb[0].mxu0 %v66
    %v172 = vpop.f32.mrb[0].mxu0
    %v173 = vadd.f32 %v88, %v172
    %v174 = vpop.f32.mrb[0].mxu0
    %v175 = vpop.f32.mrb[0].mxu0
    %v176 = vpop.f32.mrb[0].mxu0
    %177 = vdwg.mxu0
    %v178 = vmax.f32 %v173, 0.0
    %v179 = vld [vmem:[#allocation2] sm:$0xff]
    %v180 = vpack.c.bf16 %v178, %v178
    %v181 = vld [vmem:[#allocation8] sm:$0xf]
    %v182 = vld [vmem:[#allocation8 + $0x4] sm:$0xf]
    %v183 = vld [vmem:[#allocation8 + $0x8] sm:$0xf]
    %v184 = vld [vmem:[#allocation8 + $0xc] sm:$0xf]
    %v185 = vld [vmem:[#allocation8 + $0x10] sm:$0xf]
    %v186 = vld [vmem:[#allocation8 + $0x14] sm:$0xf]
    %v187 = vld [vmem:[#allocation8 + $0x18] sm:$0xf]
    %v188 = vld [vmem:[#allocation8 + $0x1c] sm:$0xf]
    %v189 = vld [vmem:[#allocation8 + $0x20] sm:$0xf]
    %v190 = vld [vmem:[#allocation8 + $0x24] sm:$0xf]
    %v191 = vld [vmem:[#allocation8 + $0x28] sm:$0xf]
    %v192 = vld [vmem:[#allocation8 + $0x2c] sm:$0xf]
    %v193 = vld [vmem:[#allocation8 + $0x30] sm:$0xf]
    %v194 = vld [vmem:[#allocation8 + $0x34] sm:$0xf]
    %v195 = vld [vmem:[#allocation8 + $0x38] sm:$0xf]
    %v196 = vld [vmem:[#allocation8 + $0x3c] sm:$0xf]
    %v213 = vunpack.c.l.b16 %v181
    %v214 = vunpack.c.l.b16 %v182
    %v215 = vunpack.c.l.b16 %v183
    %v216 = vunpack.c.l.b16 %v184
    %v217 = vunpack.c.l.b16 %v185
    %v218 = vunpack.c.l.b16 %v186
    %v219 = vunpack.c.l.b16 %v187
    %v220 = vunpack.c.l.b16 %v188
    %v221 = vunpack.c.l.b16 %v189
    %v222 = vunpack.c.l.b16 %v190
    %v223 = vunpack.c.l.b16 %v191
    %v224 = vunpack.c.l.b16 %v192
    %v225 = vunpack.c.l.b16 %v193
    %v226 = vunpack.c.l.b16 %v194
    %v227 = vunpack.c.l.b16 %v195
    %v228 = vunpack.c.l.b16 %v196
    %v229 = vpack.c.b16 %v214, %v213
    %v230 = vpack.c.b16 %v216, %v215
    %v231 = vpack.c.b16 %v218, %v217
    %v232 = vpack.c.b16 %v220, %v219
    %v233 = vpack.c.b16 %v222, %v221
    %v234 = vpack.c.b16 %v224, %v223
    %v235 = vpack.c.b16 %v226, %v225
    %v236 = vpack.c.b16 %v228, %v227
    %245 = vmatprep.subr.bf16.mxu0 0
    %246 = vmatpush1.bf16.msra.mxu0 %v229
    %247 = vmatprep.subr.bf16.mxu0 0
    %248 = vmatpush1.bf16.msra.mxu0 %v230
    %249 = vmatprep.subr.bf16.mxu0 0
    %250 = vmatpush1.bf16.msra.mxu0 %v231
    %251 = vmatprep.subr.bf16.mxu0 0
    %252 = vmatpush1.bf16.msra.mxu0 %v232
    %253 = vmatprep.subr.bf16.mxu0 0
    %254 = vmatpush1.bf16.msra.mxu0 %v233
    %255 = vmatprep.subr.bf16.mxu0 0
    %256 = vmatpush1.bf16.msra.mxu0 %v234
    %257 = vmatprep.subr.bf16.mxu0 0
    %258 = vmatpush1.bf16.msra.mxu0 %v235
    %259 = vmatprep.subr.bf16.mxu0 0
    %260 = vmatpush1.bf16.msra.mxu0 %v236
    %261 = vmatprep.subr.bf16.mxu0 0
    %262 = vmatpush1.bf16.msra.mxu0 0
    %263 = vmatprep.subr.bf16.mxu0 0
    %264 = vmatpush1.bf16.msra.mxu0 0
    %265 = vmatprep.subr.bf16.mxu0 0
    %266 = vmatpush1.bf16.msra.mxu0 0
    %267 = vmatprep.subr.bf16.mxu0 0
    %268 = vmatpush1.bf16.msra.mxu0 0
    %269 = vmatprep.subr.bf16.mxu0 0
    %270 = vmatpush1.bf16.msra.mxu0 0
    %271 = vmatprep.subr.bf16.mxu0 0
    %272 = vmatpush1.bf16.msra.mxu0 0
    %273 = vmatprep.subr.bf16.mxu0 0
    %274 = vmatpush1.bf16.msra.mxu0 0
    %275 = vmatprep.subr.bf16.mxu0 0
    %276 = vmatpush1.bf16.msra.mxu0 0
    %277 = vmatprep.mubr.bf16.mxu0 0
    %278 = vmatmul.mubr.bf16.gmra.mrb[0].mxu0 %v180
    %v279 = vpop.f32.mrb[0].mxu0
    %v280 = vadd.f32 0.0, %v279
    %v281 = vpop.f32.mrb[0].mxu0
    %v282 = vpop.f32.mrb[0].mxu0
    %v283 = vpop.f32.mrb[0].mxu0
    %284 = vdwg.mxu0
    %v285 = vadd.f32 %v179, %v280
    %286 = vst [vmem:[#allocation2] sm:$0xff] %v285
    // Predicated region
    $region38: #{tpu_custom_call.1} parent=1 // pred_check
      %p287 = pneg %p61
    $region39: #{tpu_custom_call.1} parent=1 // pred_check_branch
      %289 = sbr.rel (%p287) target = $region41
    $region40: #{tpu_custom_call.1} parent=1 // pred_region
      %v290 = vld [vmem:[#allocation2] sm:$0xff]
      %v291 = vld [vmem:[%s4] sm:$0x1]
      %v293 = vlaneseq
      %v294 = vshrl.u32 %v293, 7
      %v295 = vsub.s32 0, %v294
      %v296 = vrot.slane %v291, %v295
      %v298 = vadd.f32 %v290, %v296
      %299 = vst [vmem:[#allocation9] sm:$0xff] %v298
    $region41: #{tpu_custom_call.1} parent=1 // pred_fallthru
      _
    // Predicated region
    $region42: #{tpu_custom_call.1} parent=1 // pred_check
      _
    $region43: #{tpu_custom_call.1} parent=1 // pred_check_branch
      %301 = sbr.rel (0) target = $region45
    $region44: #{tpu_custom_call.1} parent=1 // pred_region
      %s303 = ssub.s32 128, 128
      %304 = vsyncadd [#allocation5], %s303
      %s306 = sshll.u32 [#allocation9], 4
      %s307 = int_to_ptr.vmem [resolvable:$true] %s306
      %309 = dma.vmem_to_hbm [thread:$0]  %s307, 128, %s5, [#allocation5]
    $region45: #{tpu_custom_call.1} parent=1 // pred_fallthru
      _
    // Predicated region
    $region46: #{tpu_custom_call.1} parent=1 // pred_check
      _
    $region47: #{tpu_custom_call.1} parent=1 // pred_check_branch
      %311 = sbr.rel (0) target = $region49
    $region48: #{tpu_custom_call.1} parent=1 // pred_region
      %312 = dma.done [#allocation5], 128
    $region49: #{tpu_custom_call.1} parent=1 // pred_fallthru
      _
    %313 = vsyncpa [#allocation4], 1
    %314 = vsyncpa [#allocation7], 1
    %315 = vsyncpa [#allocation5], 1

</llo_original>
